<compile_context>
chip_gen: v5e
topology: v5e:2x2
jax: 0.10.0
libtpu: 0.0.40
codegen_flags: <defaults>
</compile_context>

<pallas_src>
import functools

import jax
import jax.numpy as jnp
from jax.experimental import pallas as pl
from jax.experimental.pallas import tpu as pltpu


def _round_up(n, m):
    return ((n + m - 1) // m) * m


def _pad_to(x, shape):
    pads = [(0, s - d) for d, s in zip(x.shape, shape)]
    if all(p == (0, 0) for p in pads):
        return x
    return jnp.pad(x, pads)


# --------------------------------------------------------------------------
# Kernel
# --------------------------------------------------------------------------
def _qnet_kernel(x_ref, w1_ref, b1_ref, w2_ref, b2_ref, w3_ref, b3_ref, o_ref):
    # x arrives f32 (no wrapper pre-pass); cast to bf16 for the MXU here.
    # Accumulate in f32, bias-add + ReLU in f32 on the VPU, re-cast to bf16
    # before the next MXU pass.  Output stored f32, lane-dense (128-wide).
    x = x_ref[...].astype(jnp.bfloat16)
    h1 = jnp.dot(x, w1_ref[...], preferred_element_type=jnp.float32) + b1_ref[...]
    h1 = jnp.maximum(h1, 0.0).astype(jnp.bfloat16)
    h2 = jnp.dot(h1, w2_ref[...], preferred_element_type=jnp.float32) + b2_ref[...]
    h2 = jnp.maximum(h2, 0.0).astype(jnp.bfloat16)
    o_ref[...] = (
        jnp.dot(h2, w3_ref[...], preferred_element_type=jnp.float32) + b3_ref[...]
    )


# --------------------------------------------------------------------------
# Parameter preparation (done ONCE, cached by caller)
# --------------------------------------------------------------------------
def prepare_params(params):
    """Pad + cast weights/biases once so forward() does zero per-call prep.

    params: (w1, b1, w2, b2, w3, b3) with weights stored (in, out).
    """
    w1, b1, w2, b2, w3, b3 = params
    out_dim = w3.shape[1]
    out_pad = _round_up(out_dim, 128)
    bf = jnp.bfloat16
    return {
        "w1": w1.astype(bf),                                   # (in, 256) — K unpadded
        "b1": b1.reshape(1, -1).astype(jnp.float32),
        "w2": w2.astype(bf),                                   # (256, 512)
        "b2": b2.reshape(1, -1).astype(jnp.float32),
        "w3": _pad_to(w3, (w3.shape[0], out_pad)).astype(bf),  # (512, out_pad)
        "b3": _pad_to(b3.reshape(1, -1), (1, out_pad)).astype(jnp.float32),
        "in_dim": int(w1.shape[0]),
        "h1_dim": int(w1.shape[1]),
        "h2_dim": int(w2.shape[1]),
        "out_dim": int(out_dim),
        "out_pad": int(out_pad),
    }


def _choose_tile_b(B):
    """Biggest tile that keeps >=2 grid steps for real batches (v7x megacore)."""
    if B < 128:
        return _round_up(max(B, 8), 8)
    tile_b = 2048
    while tile_b > 128 and pl.cdiv(B, tile_b) < 2:
        tile_b //= 2
    return tile_b


# --------------------------------------------------------------------------
# Forward
# --------------------------------------------------------------------------
def qnetwork_forward(x_nchw, prepared, *, min_pallas_batch=65, return_padded=False):
    """x_nchw: (B, 3, board, board) float32 -> (B, board*board) float32
    (or the padded (b_pad, out_pad) buffer when return_padded=True so a
    consumer can fuse the slice)."""
    B = x_nchw.shape[0]
    in_dim = prepared["in_dim"]
    h1_dim = prepared["h1_dim"]
    h2_dim = prepared["h2_dim"]
    out_dim = prepared["out_dim"]
    out_pad = prepared["out_pad"]

    # torch's x.view(-1, board*board*3) on a (B, 3, board, board) tensor:
    x_flat = x_nchw.reshape(B, in_dim)

    # Tiny batches: a single-step pallas_call is pure fixed overhead; let XLA
    # fuse the three small GEMMs instead (same bf16/f32 numerics).
    if B < min_pallas_batch:
        xb = x_flat.astype(jnp.bfloat16)
        h1 = jnp.maximum(
            jnp.dot(xb, prepared["w1"], preferred_element_type=jnp.float32)
            + prepared["b1"], 0.0).astype(jnp.bfloat16)
        h2 = jnp.maximum(
            jnp.dot(h1, prepared["w2"], preferred_element_type=jnp.float32)
            + prepared["b2"], 0.0).astype(jnp.bfloat16)
        out = (jnp.dot(h2, prepared["w3"], preferred_element_type=jnp.float32)
               + prepared["b3"])
        return out if return_padded else out[:, :out_dim]

    tile_b = _choose_tile_b(B)
    n_steps = pl.cdiv(B, tile_b)
    b_pad = n_steps * tile_b
    grid = (n_steps,)

    # Only pad the batch axis (K is left at its natural width; block last dim
    # equals the full array dim, so the (8,128) rule is satisfied).
    x_p = _pad_to(x_flat, (b_pad, in_dim))

    const = lambda shape: pl.BlockSpec(shape, lambda i: tuple(0 for _ in shape))

    out_padded = pl.pallas_call(
        _qnet_kernel,
        out_shape=jax.ShapeDtypeStruct((b_pad, out_pad), jnp.float32),
        grid=grid,
        in_specs=[
            pl.BlockSpec((tile_b, in_dim), lambda i: (i, 0)),  # x: tiled over batch
            const((in_dim, h1_dim)),                           # weights: VMEM-resident
            const((1, h1_dim)),
            const((h1_dim, h2_dim)),
            const((1, h2_dim)),
            const((h2_dim, out_pad)),
            const((1, out_pad)),
        ],
        out_specs=pl.BlockSpec((tile_b, out_pad), lambda i: (i, 0)),
        compiler_params=pltpu.CompilerParams(
            dimension_semantics=("parallel",),
            # ~13 MiB working set at tile_b=2048; 32 MiB covers it with
            # double-buffering headroom and lifts v5e's 16 MiB default.
            vmem_limit_bytes=32 * 1024 * 1024,
        ),
    )(x_p, prepared["w1"], prepared["b1"], prepared["w2"], prepared["b2"],
      prepared["w3"], prepared["b3"])

    if return_padded:
        return out_padded
    return out_padded[:B, :out_dim]


# --------------------------------------------------------------------------
# Init / reference
# --------------------------------------------------------------------------
def init_params(board_size, key):
    """torch.nn.Linear-style init (uniform +-1/sqrt(fan_in)), weights (in, out)."""
    dims = [board_size * board_size * 3, 256, 512, board_size * board_size]
    params = []
    keys = jax.random.split(key, 6)
    k_iter = iter(keys)
    for fan_in, fan_out in zip(dims[:-1], dims[1:]):
        bound = 1.0 / (fan_in ** 0.5)
        w = jax.random.uniform(next(k_iter), (fan_in, fan_out),
                               minval=-bound, maxval=bound, dtype=jnp.float32)
        b = jax.random.uniform(next(k_iter), (1, fan_out),
                               minval=-bound, maxval=bound, dtype=jnp.float32)
        params += [w, b]
    return tuple(params)


def _reference_forward(x_nchw, params):
    # Mirrors the kernel's numerics: bf16 MXU inputs, f32 accumulation,
    # f32 bias-add + ReLU.
    w1, b1, w2, b2, w3, b3 = params
    bf = jnp.bfloat16
    x = x_nchw.reshape(x_nchw.shape[0], -1).astype(bf)
    h1 = jnp.maximum(
        jnp.dot(x, w1.astype(bf), preferred_element_type=jnp.float32) + b1, 0.0)
    h2 = jnp.maximum(
        jnp.dot(h1.astype(bf), w2.astype(bf), preferred_element_type=jnp.float32) + b2, 0.0)
    return jnp.dot(h2.astype(bf), w3.astype(bf),
                   preferred_element_type=jnp.float32) + b3


if __name__ == "__main__":
    board_size = 4   # input dim 48, output dim 16
    key = jax.random.PRNGKey(0)
    k_x1, k_x2, k_p = jax.random.split(key, 3)

    params = init_params(board_size, k_p)
    prepared = prepare_params(params)   # pad/cast once, cached

    # 1) Small batch, Pallas path forced (min_pallas_batch=0) — exercises the kernel.
    x_small = jax.random.normal(k_x1, (2, 3, board_size, board_size), dtype=jnp.float32)
    out_small = jax.block_until_ready(
        qnetwork_forward(x_small, prepared, min_pallas_batch=0))
    ref_small = _reference_forward(x_small, params)
    assert out_small.shape == (2, board_size * board_size)
    assert jnp.allclose(out_small, ref_small, atol=2e-2, rtol=2e-2)

    # 2) Larger batch through the default dispatch — multi-step grid (2 steps).
    x_big = jax.random.normal(k_x2, (512, 3, board_size, board_size), dtype=jnp.float32)
    out_big = jax.block_until_ready(qnetwork_forward(x_big, prepared))
    ref_big = _reference_forward(x_big, params)
    assert out_big.shape == (512, board_size * board_size)
    assert jnp.allclose(out_big, ref_big, atol=2e-2, rtol=2e-2)

    # 3) Tiny-batch XLA fallback path (default threshold) for correctness.
    out_xla = jax.block_until_ready(qnetwork_forward(x_small, prepared))
    assert jnp.allclose(out_xla, ref_small, atol=2e-2, rtol=2e-2)

    print("KERNEL_OK")
</pallas_src>

<mosaic_0001>
module attributes {stable_mosaic.version = 11 : i64} {
  func.func @_qnet_kernel(%arg0: i32, %arg1: memref<8x48xf32, #tpu.memory_space<vmem>>, %arg2: memref<48x256xbf16, #tpu.memory_space<vmem>>, %arg3: memref<1x256xf32, #tpu.memory_space<vmem>>, %arg4: memref<256x512xbf16, #tpu.memory_space<vmem>>, %arg5: memref<1x512xf32, #tpu.memory_space<vmem>>, %arg6: memref<512x128xbf16, #tpu.memory_space<vmem>>, %arg7: memref<1x128xf32, #tpu.memory_space<vmem>>, %arg8: memref<8x128xf32, #tpu.memory_space<vmem>>) attributes {dimension_semantics = [#tpu.dimension_semantics<parallel>], iteration_bounds = array<i64: 1>, scalar_prefetch = 0 : i64, scratch_operands = 0 : i64, tpu.core_type = #tpu.core_type<tc>, window_params = [{transform_indices = @transform_0, window_bounds = array<i64: 8, 48>}, {pipeline_mode = #tpu.pipeline_mode<synchronous>, transform_indices = @transform_1, window_bounds = array<i64: 48, 256>}, {pipeline_mode = #tpu.pipeline_mode<synchronous>, transform_indices = @transform_2, window_bounds = array<i64: 1, 256>}, {pipeline_mode = #tpu.pipeline_mode<synchronous>, transform_indices = @transform_3, window_bounds = array<i64: 256, 512>}, {pipeline_mode = #tpu.pipeline_mode<synchronous>, transform_indices = @transform_4, window_bounds = array<i64: 1, 512>}, {pipeline_mode = #tpu.pipeline_mode<synchronous>, transform_indices = @transform_5, window_bounds = array<i64: 512, 128>}, {pipeline_mode = #tpu.pipeline_mode<synchronous>, transform_indices = @transform_6, window_bounds = array<i64: 1, 128>}, {transform_indices = @transform_7, window_bounds = array<i64: 8, 128>}]} {
    %c0 = arith.constant 0 : index
    %c0_0 = arith.constant 0 : index
    %0 = vector.load %arg1[%c0, %c0_0] : memref<8x48xf32, #tpu.memory_space<vmem>>, vector<8x48xf32>
    %1 = arith.truncf %0 : vector<8x48xf32> to vector<8x48xbf16>
    %c0_1 = arith.constant 0 : index
    %c0_2 = arith.constant 0 : index
    %2 = vector.load %arg2[%c0_1, %c0_2] : memref<48x256xbf16, #tpu.memory_space<vmem>>, vector<48x256xbf16>
    %cst = arith.constant dense<0.000000e+00> : vector<8x256xf32>
    %3 = tpu.matmul %1, %2, %cst {dimension_numbers = #tpu.dot_dimension_numbers<[1], [0], [0], [1], [0, 0, 1, 1], [], []>} : vector<8x48xbf16>, vector<48x256xbf16>, vector<8x256xf32> -> vector<8x256xf32>
    %c0_3 = arith.constant 0 : index
    %c0_4 = arith.constant 0 : index
    %4 = vector.load %arg3[%c0_3, %c0_4] : memref<1x256xf32, #tpu.memory_space<vmem>>, vector<1x256xf32>
    %5 = vector.broadcast %4 : vector<1x256xf32> to vector<8x256xf32>
    %6 = arith.addf %3, %5 : vector<8x256xf32>
    %cst_5 = arith.constant 0.000000e+00 : f32
    %7 = vector.broadcast %cst_5 : f32 to vector<8x256xf32>
    %8 = arith.maximumf %6, %7 : vector<8x256xf32>
    %9 = arith.truncf %8 : vector<8x256xf32> to vector<8x256xbf16>
    %c0_6 = arith.constant 0 : index
    %c0_7 = arith.constant 0 : index
    %10 = vector.load %arg4[%c0_6, %c0_7] : memref<256x512xbf16, #tpu.memory_space<vmem>>, vector<256x512xbf16>
    %cst_8 = arith.constant dense<0.000000e+00> : vector<8x512xf32>
    %11 = tpu.matmul %9, %10, %cst_8 {dimension_numbers = #tpu.dot_dimension_numbers<[1], [0], [0], [1], [0, 0, 1, 1], [], []>} : vector<8x256xbf16>, vector<256x512xbf16>, vector<8x512xf32> -> vector<8x512xf32>
    %c0_9 = arith.constant 0 : index
    %c0_10 = arith.constant 0 : index
    %12 = vector.load %arg5[%c0_9, %c0_10] : memref<1x512xf32, #tpu.memory_space<vmem>>, vector<1x512xf32>
    %13 = vector.broadcast %12 : vector<1x512xf32> to vector<8x512xf32>
    %14 = arith.addf %11, %13 : vector<8x512xf32>
    %cst_11 = arith.constant 0.000000e+00 : f32
    %15 = vector.broadcast %cst_11 : f32 to vector<8x512xf32>
    %16 = arith.maximumf %14, %15 : vector<8x512xf32>
    %17 = arith.truncf %16 : vector<8x512xf32> to vector<8x512xbf16>
    %c0_12 = arith.constant 0 : index
    %c0_13 = arith.constant 0 : index
    %18 = vector.load %arg6[%c0_12, %c0_13] : memref<512x128xbf16, #tpu.memory_space<vmem>>, vector<512x128xbf16>
    %cst_14 = arith.constant dense<0.000000e+00> : vector<8x128xf32>
    %19 = tpu.matmul %17, %18, %cst_14 {dimension_numbers = #tpu.dot_dimension_numbers<[1], [0], [0], [1], [0, 0, 1, 1], [], []>} : vector<8x512xbf16>, vector<512x128xbf16>, vector<8x128xf32> -> vector<8x128xf32>
    %c0_15 = arith.constant 0 : index
    %c0_16 = arith.constant 0 : index
    %20 = vector.load %arg7[%c0_15, %c0_16] : memref<1x128xf32, #tpu.memory_space<vmem>>, vector<1x128xf32>
    %21 = vector.broadcast %20 : vector<1x128xf32> to vector<8x128xf32>
    %22 = arith.addf %19, %21 : vector<8x128xf32>
    %c0_17 = arith.constant 0 : index
    %c0_18 = arith.constant 0 : index
    %23 = vector.load %arg8[%c0_17, %c0_18] : memref<8x128xf32, #tpu.memory_space<vmem>>, vector<8x128xf32>
    tpu.vector_store %arg8[%c0_17, %c0_18], %22 {strides = array<i32>} : memref<8x128xf32, #tpu.memory_space<vmem>>, vector<8x128xf32>,
    return
  }
  func.func @transform_0(%arg0: i32) -> (i32, i32) {
    %c0_i32 = arith.constant 0 : i32
    %c0_i32_0 = arith.constant 0 : i32
    return %arg0, %c0_i32 : i32, i32
  }
  func.func @transform_1(%arg0: i32) -> (i32, i32) {
    %c0_i32 = arith.constant 0 : i32
    %c0_i32_0 = arith.constant 0 : i32
    %c0_i32_1 = arith.constant 0 : i32
    return %c0_i32, %c0_i32_0 : i32, i32
  }
  func.func @transform_2(%arg0: i32) -> (i32, i32) {
    %c0_i32 = arith.constant 0 : i32
    %c0_i32_0 = arith.constant 0 : i32
    %c0_i32_1 = arith.constant 0 : i32
    return %c0_i32, %c0_i32_0 : i32, i32
  }
  func.func @transform_3(%arg0: i32) -> (i32, i32) {
    %c0_i32 = arith.constant 0 : i32
    %c0_i32_0 = arith.constant 0 : i32
    %c0_i32_1 = arith.constant 0 : i32
    return %c0_i32, %c0_i32_0 : i32, i32
  }
  func.func @transform_4(%arg0: i32) -> (i32, i32) {
    %c0_i32 = arith.constant 0 : i32
    %c0_i32_0 = arith.constant 0 : i32
    %c0_i32_1 = arith.constant 0 : i32
    return %c0_i32, %c0_i32_0 : i32, i32
  }
  func.func @transform_5(%arg0: i32) -> (i32, i32) {
    %c0_i32 = arith.constant 0 : i32
    %c0_i32_0 = arith.constant 0 : i32
    %c0_i32_1 = arith.constant 0 : i32
    return %c0_i32, %c0_i32_0 : i32, i32
  }
  func.func @transform_6(%arg0: i32) -> (i32, i32) {
    %c0_i32 = arith.constant 0 : i32
    %c0_i32_0 = arith.constant 0 : i32
    %c0_i32_1 = arith.constant 0 : i32
    return %c0_i32, %c0_i32_0 : i32, i32
  }
  func.func @transform_7(%arg0: i32) -> (i32, i32) {
    %c0_i32 = arith.constant 0 : i32
    %c0_i32_0 = arith.constant 0 : i32
    return %arg0, %c0_i32 : i32, i32
  }
}

</mosaic_0001>

<llo_original>
// kernel: tpu_custom_call.1
$region0: #{tpu_custom_call.1}
  #allocation0 [shape = 'u32[]', space=smem, size = 0x4, offset = 0x4, fixed_abs, tag = 'smem constant byte address 0x4 - core index']
  #allocation1 [shape = 'u32[72,128]{1,0:T(1,128)}', space=vmem, size = 0x9000, scoped, tag = 'internal scratch']
  %s0 = inlined_call_operand.hbm [shape: f32[8,48], index: 0, kind: input, shape index: {}]
  %s1 = inlined_call_operand.hbm [shape: bf16[48,256], index: 1, kind: input, shape index: {}]
  %s2 = inlined_call_operand.hbm [shape: f32[1,256], index: 2, kind: input, shape index: {}]
  %s3 = inlined_call_operand.hbm [shape: bf16[256,512], index: 3, kind: input, shape index: {}]
  %s4 = inlined_call_operand.hbm [shape: f32[1,512], index: 4, kind: input, shape index: {}]
  %s5 = inlined_call_operand.hbm [shape: bf16[512,128], index: 5, kind: input, shape index: {}]
  %s6 = inlined_call_operand.vmem [shape: f32[1,128], index: 6, kind: input, shape index: {}]
  %s7 = inlined_call_operand.hbm [shape: f32[8,128], index: 7, kind: output, shape index: {}]
  %s8 = sld [smem:[#allocation0]]
  $region62: #{tpu_custom_call.1} parent=0
    _
  %s10 = ssub.s32 1, %s8
  %s11 = scalar_select 0, %s10, %s8
  $region1: #{tpu_custom_call.1} parent=0
    #allocation2 [shape = 'u8[4096]{0}', space=vmem, size = 0x1000, scoped, tag = 'input window, operand 0, single buffered']
    #allocation3 [shape = 's32[1]{0}', space=sflag, size = 0x4, scoped, tag = 'scoped memory for tpu_custom_call.1']
    #allocation4 [shape = 's32[1]{0}', space=sflag, size = 0x4, scoped, tag = 'scoped memory for tpu_custom_call.1']
    #allocation5 [shape = 'u8[24576]{0}', space=vmem, size = 0x6000, scoped, tag = 'input window, operand 1, single buffered']
    #allocation6 [shape = 's32[1]{0}', space=sflag, size = 0x4, scoped, tag = 'scoped memory for tpu_custom_call.1']
    #allocation7 [shape = 'u8[1024]{0}', space=vmem, size = 0x400, scoped, tag = 'input window, operand 2, single buffered']
    #allocation8 [shape = 'u8[262144]{0}', space=vmem, size = 0x40000, scoped, tag = 'input window, operand 3, single buffered']
    #allocation9 [shape = 's32[1]{0}', space=sflag, size = 0x4, scoped, tag = 'scoped memory for tpu_custom_call.1']
    #allocation10 [shape = 'u8[2048]{0}', space=vmem, size = 0x800, scoped, tag = 'input window, operand 4, single buffered']
    #allocation11 [shape = 'u8[131072]{0}', space=vmem, size = 0x20000, scoped, tag = 'input window, operand 5, single buffered']
    #allocation12 [shape = 's32[1]{0}', space=sflag, size = 0x4, scoped, tag = 'scoped memory for tpu_custom_call.1']
    #allocation13 [shape = 'u8[4096]{0}', space=vmem, size = 0x1000, scoped, tag = 'output window, operand 0, single buffered']
    %12 = vsyncpa [#allocation3], 0
    %13 = vsyncpa [#allocation6], 0
    %14 = vsyncpa [#allocation9], 0
    %15 = vsyncpa [#allocation12], 0
    %16 = vsyncpa [#allocation4], 0
    // Predicated region
    $region2: #{tpu_custom_call.1} parent=1 // pred_check
      _
    $region3: #{tpu_custom_call.1} parent=1 // pred_check_branch
      %18 = sbr.rel (0) target = $region5
    $region4: #{tpu_custom_call.1} parent=1 // pred_region
      %20 = vsyncadd [#allocation3], 0
      %s22 = sshll.u32 %s0, 4
      %s23 = int_to_ptr.hbm [resolvable:$true] %s22
      %s24 = sshll.u32 [#allocation2], 4
      %s25 = int_to_ptr.vmem [resolvable:$true] %s24
      %27 = dma.hbm_to_vmem [thread:$0]  %s23, 128, %s25, [#allocation3]
    $region5: #{tpu_custom_call.1} parent=1 // pred_fallthru
      _
    // Predicated region
    $region6: #{tpu_custom_call.1} parent=1 // pred_check
      _
    $region7: #{tpu_custom_call.1} parent=1 // pred_check_branch
      %29 = sbr.rel (0) target = $region9
    $region8: #{tpu_custom_call.1} parent=1 // pred_region
      %31 = vsyncadd [#allocation6], 0
      %s32 = sshll.u32 %s1, 4
      %s33 = int_to_ptr.hbm [resolvable:$true] %s32
      %s34 = sshll.u32 [#allocation5], 4
      %s35 = int_to_ptr.vmem [resolvable:$true] %s34
      %40 = dma.hbm_to_vmem [thread:$0]  %s33, 768, %s35, [#allocation6], 128, 128, 8
    $region9: #{tpu_custom_call.1} parent=1 // pred_fallthru
      _
    // Predicated region
    $region10: #{tpu_custom_call.1} parent=1 // pred_check
      _
    $region11: #{tpu_custom_call.1} parent=1 // pred_check_branch
      %42 = sbr.rel (0) target = $region13
    $region12: #{tpu_custom_call.1} parent=1 // pred_region
      %44 = vsyncadd [#allocation6], 0
      %s46 = sshll.u32 %s2, 4
      %s47 = int_to_ptr.hbm [resolvable:$true] %s46
      %s48 = sshll.u32 [#allocation7], 4
      %s49 = int_to_ptr.vmem [resolvable:$true] %s48
      %51 = dma.hbm_to_vmem [thread:$0]  %s47, 32, %s49, [#allocation6]
    $region13: #{tpu_custom_call.1} parent=1 // pred_fallthru
      _
    // Predicated region
    $region14: #{tpu_custom_call.1} parent=1 // pred_check
      _
    $region15: #{tpu_custom_call.1} parent=1 // pred_check_branch
      %53 = sbr.rel (0) target = $region17
    $region16: #{tpu_custom_call.1} parent=1 // pred_region
      %55 = vsyncadd [#allocation9], 0
      %s56 = sshll.u32 %s3, 4
      %s57 = int_to_ptr.hbm [resolvable:$true] %s56
      %s58 = sshll.u32 [#allocation8], 4
      %s59 = int_to_ptr.vmem [resolvable:$true] %s58
      %64 = dma.hbm_to_vmem [thread:$0]  %s57, 8192, %s59, [#allocation9], 256, 256, 16
    $region17: #{tpu_custom_call.1} parent=1 // pred_fallthru
      _
    // Predicated region
    $region18: #{tpu_custom_call.1} parent=1 // pred_check
      _
    $region19: #{tpu_custom_call.1} parent=1 // pred_check_branch
      %66 = sbr.rel (0) target = $region21
    $region20: #{tpu_custom_call.1} parent=1 // pred_region
      %68 = vsyncadd [#allocation9], 0
      %s70 = sshll.u32 %s4, 4
      %s71 = int_to_ptr.hbm [resolvable:$true] %s70
      %s72 = sshll.u32 [#allocation10], 4
      %s73 = int_to_ptr.vmem [resolvable:$true] %s72
      %75 = dma.hbm_to_vmem [thread:$0]  %s71, 64, %s73, [#allocation9]
    $region21: #{tpu_custom_call.1} parent=1 // pred_fallthru
      _
    // Predicated region
    $region22: #{tpu_custom_call.1} parent=1 // pred_check
      _
    $region23: #{tpu_custom_call.1} parent=1 // pred_check_branch
      %77 = sbr.rel (0) target = $region25
    $region24: #{tpu_custom_call.1} parent=1 // pred_region
      %79 = vsyncadd [#allocation12], 0
      %s80 = sshll.u32 %s5, 4
      %s81 = int_to_ptr.hbm [resolvable:$true] %s80
      %s82 = sshll.u32 [#allocation11], 4
      %s83 = int_to_ptr.vmem [resolvable:$true] %s82
      %88 = dma.hbm_to_vmem [thread:$0]  %s81, 4096, %s83, [#allocation12], 64, 64, 4
    $region25: #{tpu_custom_call.1} parent=1 // pred_fallthru
      _
    // Predicated region
    $region26: #{tpu_custom_call.1} parent=1 // pred_check
      _
    $region27: #{tpu_custom_call.1} parent=1 // pred_check_branch
      %90 = sbr.rel (0) target = $region29
    $region28: #{tpu_custom_call.1} parent=1 // pred_region
      _
    $region29: #{tpu_custom_call.1} parent=1 // pred_fallthru
      _
    // Predicated region
    $region30: #{tpu_custom_call.1} parent=1 // pred_check
      _
    $region31: #{tpu_custom_call.1} parent=1 // pred_check_branch
      %92 = sbr.rel (0) target = $region33
    $region32: #{tpu_custom_call.1} parent=1 // pred_region
      %94 = dma.done [#allocation3], 128
    $region33: #{tpu_custom_call.1} parent=1 // pred_fallthru
      _
    // Predicated region
    $region34: #{tpu_custom_call.1} parent=1 // pred_check
      _
    $region35: #{tpu_custom_call.1} parent=1 // pred_check_branch
      %96 = sbr.rel (0) target = $region37
    $region36: #{tpu_custom_call.1} parent=1 // pred_region
      %98 = dma.done [#allocation6], 768
    $region37: #{tpu_custom_call.1} parent=1 // pred_fallthru
      _
    // Predicated region
    $region38: #{tpu_custom_call.1} parent=1 // pred_check
      _
    $region39: #{tpu_custom_call.1} parent=1 // pred_check_branch
      %100 = sbr.rel (0) target = $region41
    $region40: #{tpu_custom_call.1} parent=1 // pred_region
      %102 = dma.done [#allocation6], 32
    $region41: #{tpu_custom_call.1} parent=1 // pred_fallthru
      _
    // Predicated region
    $region42: #{tpu_custom_call.1} parent=1 // pred_check
      _
    $region43: #{tpu_custom_call.1} parent=1 // pred_check_branch
      %104 = sbr.rel (0) target = $region45
    $region44: #{tpu_custom_call.1} parent=1 // pred_region
      %106 = dma.done [#allocation9], 8192
    $region45: #{tpu_custom_call.1} parent=1 // pred_fallthru
      _
    // Predicated region
    $region46: #{tpu_custom_call.1} parent=1 // pred_check
      _
    $region47: #{tpu_custom_call.1} parent=1 // pred_check_branch
      %108 = sbr.rel (0) target = $region49
    $region48: #{tpu_custom_call.1} parent=1 // pred_region
      %110 = dma.done [#allocation9], 64
    $region49: #{tpu_custom_call.1} parent=1 // pred_fallthru
      _
    // Predicated region
    $region50: #{tpu_custom_call.1} parent=1 // pred_check
      _
    $region51: #{tpu_custom_call.1} parent=1 // pred_check_branch
      %112 = sbr.rel (0) target = $region53
    $region52: #{tpu_custom_call.1} parent=1 // pred_region
      %114 = dma.done [#allocation12], 4096
    $region53: #{tpu_custom_call.1} parent=1 // pred_fallthru
      _
    %v116 = vld [vmem:[#allocation2] sm:$0xff]
    %v117 = vpack.c.bf16 %v116, %v116
    %v118 = vld [vmem:[#allocation5] sm:$0xff]
    %v119 = vld [vmem:[#allocation5 + $0x8] sm:$0xff]
    %v120 = vld [vmem:[#allocation5 + $0x10] sm:$0xff]
    %v121 = vld [vmem:[#allocation5 + $0x18] sm:$0xff]
    %v122 = vld [vmem:[#allocation5 + $0x20] sm:$0xff]
    %v123 = vld [vmem:[#allocation5 + $0x28] sm:$0xff]
    %v124 = vld [vmem:[#allocation7] sm:$0x3]
    %v126 = vperm.slane %v124, 0
    %v127 = vperm.slane %v124, 1
    %v136 = vunpack.c.l.b16 %v118
    %v137 = vunpack.c.h.b16 %v118
    %v138 = vunpack.c.l.b16 %v119
    %v139 = vunpack.c.h.b16 %v119
    %v140 = vunpack.c.l.b16 %v120
    %v141 = vunpack.c.h.b16 %v120
    %v142 = vunpack.c.l.b16 %v121
    %v143 = vunpack.c.h.b16 %v121
    %v144 = vunpack.c.l.b16 %v122
    %v145 = vunpack.c.h.b16 %v122
    %v146 = vunpack.c.l.b16 %v123
    %v147 = vunpack.c.h.b16 %v123
    %v148 = vpack.c.b16 %v138, %v136
    %v149 = vpack.c.b16 %v139, %v137
    %v150 = vpack.c.b16 %v142, %v140
    %v151 = vpack.c.b16 %v143, %v141
    %v152 = vpack.c.b16 %v146, %v144
    %v153 = vpack.c.b16 %v147, %v145
    %vm160 = vcmask 392192
    %v162 = vsel %vm160, %v117, 0
    %164 = vmatpush.bf16.msra.mxu0 0
    %165 = vmatpush.bf16.msra.mxu0 0
    %166 = vmatpush.bf16.msra.mxu0 0
    %167 = vmatpush.bf16.msra.mxu0 0
    %168 = vmatpush.bf16.msra.mxu0 0
    %169 = vmatpush.bf16.msra.mxu0 %v152
    %170 = vmatpush.bf16.msra.mxu0 %v150
    %171 = vmatpush.bf16.msra.mxu0 %v148
    %172 = vmatmul.bf16.gmra.mxu0 %v162
    %v173 = vpop.f32.mrf.mxu0
    %v174 = vadd.f32 %v126, %v173
    %v175 = vpop.f32.mrf.mxu0
    %176 = vdwg.mxu0
    %177 = vmatpush.bf16.msra.mxu0 0
    %178 = vmatpush.bf16.msra.mxu0 0
    %179 = vmatpush.bf16.msra.mxu0 0
    %180 = vmatpush.bf16.msra.mxu0 0
    %181 = vmatpush.bf16.msra.mxu0 0
    %182 = vmatpush.bf16.msra.mxu0 %v153
    %183 = vmatpush.bf16.msra.mxu0 %v151
    %184 = vmatpush.bf16.msra.mxu0 %v149
    %185 = vmatmul.bf16.gmra.mxu0 %v162
    %v186 = vpop.f32.mrf.mxu0
    %v187 = vadd.f32 %v127, %v186
    %v188 = vpop.f32.mrf.mxu0
    %189 = vdwg.mxu0
    %v190 = vmax.f32 %v174, 0.0
    %v191 = vmax.f32 %v187, 0.0
    %v192 = vpack.c.bf16 %v190, %v190
    %v193 = vpack.c.bf16 %v191, %v191
    %v194 = vld [vmem:[#allocation8] sm:$0xff]
    %v195 = vld [vmem:[#allocation8 + $0x8] sm:$0xff]
    %v196 = vld [vmem:[#allocation8 + $0x10] sm:$0xff]
    %v197 = vld [vmem:[#allocation8 + $0x18] sm:$0xff]
    %v198 = vld [vmem:[#allocation8 + $0x20] sm:$0xff]
    %v199 = vld [vmem:[#allocation8 + $0x28] sm:$0xff]
    %v200 = vld [vmem:[#allocation8 + $0x30] sm:$0xff]
    %v201 = vld [vmem:[#allocation8 + $0x38] sm:$0xff]
    %v202 = vld [vmem:[#allocation8 + $0x40] sm:$0xff]
    %v203 = vld [vmem:[#allocation8 + $0x48] sm:$0xff]
    %v204 = vld [vmem:[#allocation8 + $0x50] sm:$0xff]
    %v205 = vld [vmem:[#allocation8 + $0x58] sm:$0xff]
    %v206 = vld [vmem:[#allocation8 + $0x60] sm:$0xff]
    %v207 = vld [vmem:[#allocation8 + $0x68] sm:$0xff]
    %v208 = vld [vmem:[#allocation8 + $0x70] sm:$0xff]
    %v209 = vld [vmem:[#allocation8 + $0x78] sm:$0xff]
    %v210 = vld [vmem:[#allocation8 + $0x80] sm:$0xff]
    %v211 = vld [vmem:[#allocation8 + $0x88] sm:$0xff]
    %v212 = vld [vmem:[#allocation8 + $0x90] sm:$0xff]
    %v213 = vld [vmem:[#allocation8 + $0x98] sm:$0xff]
    %v214 = vld [vmem:[#allocation8 + $0xa0] sm:$0xff]
    %v215 = vld [vmem:[#allocation8 + $0xa8] sm:$0xff]
    %v216 = vld [vmem:[#allocation8 + $0xb0] sm:$0xff]
    %v217 = vld [vmem:[#allocation8 + $0xb8] sm:$0xff]
    %v218 = vld [vmem:[#allocation8 + $0xc0] sm:$0xff]
    %v219 = vld [vmem:[#allocation8 + $0xc8] sm:$0xff]
    %v220 = vld [vmem:[#allocation8 + $0xd0] sm:$0xff]
    %v221 = vld [vmem:[#allocation8 + $0xd8] sm:$0xff]
    %v222 = vld [vmem:[#allocation8 + $0xe0] sm:$0xff]
    %v223 = vld [vmem:[#allocation8 + $0xe8] sm:$0xff]
    %v224 = vld [vmem:[#allocation8 + $0xf0] sm:$0xff]
    %v225 = vld [vmem:[#allocation8 + $0xf8] sm:$0xff]
    %v226 = vld [vmem:[#allocation8 + $0x100] sm:$0xff]
    %v227 = vld [vmem:[#allocation8 + $0x108] sm:$0xff]
    %v228 = vld [vmem:[#allocation8 + $0x110] sm:$0xff]
    %v229 = vld [vmem:[#allocation8 + $0x118] sm:$0xff]
    %v230 = vld [vmem:[#allocation8 + $0x120] sm:$0xff]
    %v231 = vld [vmem:[#allocation8 + $0x128] sm:$0xff]
    %v232 = vld [vmem:[#allocation8 + $0x130] sm:$0xff]
    %v233 = vld [vmem:[#allocation8 + $0x138] sm:$0xff]
    %v234 = vld [vmem:[#allocation8 + $0x140] sm:$0xff]
    %v235 = vld [vmem:[#allocation8 + $0x148] sm:$0xff]
    %v236 = vld [vmem:[#allocation8 + $0x150] sm:$0xff]
    %v237 = vld [vmem:[#allocation8 + $0x158] sm:$0xff]
    %v238 = vld [vmem:[#allocation8 + $0x160] sm:$0xff]
    %v239 = vld [vmem:[#allocation8 + $0x168] sm:$0xff]
    %v240 = vld [vmem:[#allocation8 + $0x170] sm:$0xff]
    %v241 = vld [vmem:[#allocation8 + $0x178] sm:$0xff]
    %v242 = vld [vmem:[#allocation8 + $0x180] sm:$0xff]
    %v243 = vld [vmem:[#allocation8 + $0x188] sm:$0xff]
    %v244 = vld [vmem:[#allocation8 + $0x190] sm:$0xff]
    %v245 = vld [vmem:[#allocation8 + $0x198] sm:$0xff]
    %v246 = vld [vmem:[#allocation8 + $0x1a0] sm:$0xff]
    %v247 = vld [vmem:[#allocation8 + $0x1a8] sm:$0xff]
    %v248 = vld [vmem:[#allocation8 + $0x1b0] sm:$0xff]
    %v249 = vld [vmem:[#allocation8 + $0x1b8] sm:$0xff]
    %v250 = vld [vmem:[#allocation8 + $0x1c0] sm:$0xff]
    %v251 = vld [vmem:[#allocation8 + $0x1c8] sm:$0xff]
    %v252 = vld [vmem:[#allocation8 + $0x1d0] sm:$0xff]
    %v253 = vld [vmem:[#allocation8 + $0x1d8] sm:$0xff]
    %v254 = vld [vmem:[#allocation8 + $0x1e0] sm:$0xff]
    %v255 = vld [vmem:[#allocation8 + $0x1e8] sm:$0xff]
    %v256 = vld [vmem:[#allocation8 + $0x1f0] sm:$0xff]
    %v257 = vld [vmem:[#allocation8 + $0x1f8] sm:$0xff]
    %v258 = vld [vmem:[#allocation10] sm:$0xf]
    %v260 = vperm.slane %v258, 0
    %v261 = vperm.slane %v258, 1
    %v262 = vperm.slane %v258, 2
    %v263 = vperm.slane %v258, 3
    %v332 = vunpack.c.l.b16 %v194
    %v333 = vunpack.c.h.b16 %v194
    %v334 = vunpack.c.l.b16 %v195
    %v335 = vunpack.c.h.b16 %v195
    %v336 = vunpack.c.l.b16 %v196
    %v337 = vunpack.c.h.b16 %v196
    %v338 = vunpack.c.l.b16 %v197
    %v339 = vunpack.c.h.b16 %v197
    %v340 = vunpack.c.l.b16 %v198
    %v341 = vunpack.c.h.b16 %v198
    %v342 = vunpack.c.l.b16 %v199
    %v343 = vunpack.c.h.b16 %v199
    %v344 = vunpack.c.l.b16 %v200
    %v345 = vunpack.c.h.b16 %v200
    %v346 = vunpack.c.l.b16 %v201
    %v347 = vunpack.c.h.b16 %v201
    %v348 = vunpack.c.l.b16 %v202
    %v349 = vunpack.c.h.b16 %v202
    %v350 = vunpack.c.l.b16 %v203
    %v351 = vunpack.c.h.b16 %v203
    %v352 = vunpack.c.l.b16 %v204
    %v353 = vunpack.c.h.b16 %v204
    %v354 = vunpack.c.l.b16 %v205
    %v355 = vunpack.c.h.b16 %v205
    %v356 = vunpack.c.l.b16 %v206
    %v357 = vunpack.c.h.b16 %v206
    %v358 = vunpack.c.l.b16 %v207
    %v359 = vunpack.c.h.b16 %v207
    %v360 = vunpack.c.l.b16 %v208
    %v361 = vunpack.c.h.b16 %v208
    %v362 = vunpack.c.l.b16 %v209
    %v363 = vunpack.c.h.b16 %v209
    %v364 = vunpack.c.l.b16 %v210
    %v365 = vunpack.c.h.b16 %v210
    %v366 = vunpack.c.l.b16 %v211
    %v367 = vunpack.c.h.b16 %v211
    %v368 = vunpack.c.l.b16 %v212
    %v369 = vunpack.c.h.b16 %v212
    %v370 = vunpack.c.l.b16 %v213
    %v371 = vunpack.c.h.b16 %v213
    %v372 = vunpack.c.l.b16 %v214
    %v373 = vunpack.c.h.b16 %v214
    %v374 = vunpack.c.l.b16 %v215
    %v375 = vunpack.c.h.b16 %v215
    %v376 = vunpack.c.l.b16 %v216
    %v377 = vunpack.c.h.b16 %v216
    %v378 = vunpack.c.l.b16 %v217
    %v379 = vunpack.c.h.b16 %v217
    %v380 = vunpack.c.l.b16 %v218
    %v381 = vunpack.c.h.b16 %v218
    %v382 = vunpack.c.l.b16 %v219
    %v383 = vunpack.c.h.b16 %v219
    %v384 = vunpack.c.l.b16 %v220
    %v385 = vunpack.c.h.b16 %v220
    %v386 = vunpack.c.l.b16 %v221
    %v387 = vunpack.c.h.b16 %v221
    %v388 = vunpack.c.l.b16 %v222
    %v389 = vunpack.c.h.b16 %v222
    %v390 = vunpack.c.l.b16 %v223
    %v391 = vunpack.c.h.b16 %v223
    %v392 = vunpack.c.l.b16 %v224
    %v393 = vunpack.c.h.b16 %v224
    %v394 = vunpack.c.l.b16 %v225
    %v395 = vunpack.c.h.b16 %v225
    %v396 = vunpack.c.l.b16 %v226
    %v397 = vunpack.c.h.b16 %v226
    %v398 = vunpack.c.l.b16 %v227
    %v399 = vunpack.c.h.b16 %v227
    %v400 = vunpack.c.l.b16 %v228
    %v401 = vunpack.c.h.b16 %v228
    %v402 = vunpack.c.l.b16 %v229
    %v403 = vunpack.c.h.b16 %v229
    %v404 = vunpack.c.l.b16 %v230
    %v405 = vunpack.c.h.b16 %v230
    %v406 = vunpack.c.l.b16 %v231
    %v407 = vunpack.c.h.b16 %v231
    %v408 = vunpack.c.l.b16 %v232
    %v409 = vunpack.c.h.b16 %v232
    %v410 = vunpack.c.l.b16 %v233
    %v411 = vunpack.c.h.b16 %v233
    %v412 = vunpack.c.l.b16 %v234
    %v413 = vunpack.c.h.b16 %v234
    %v414 = vunpack.c.l.b16 %v235
    %v415 = vunpack.c.h.b16 %v235
    %v416 = vunpack.c.l.b16 %v236
    %v417 = vunpack.c.h.b16 %v236
    %v418 = vunpack.c.l.b16 %v237
    %v419 = vunpack.c.h.b16 %v237
    %v420 = vunpack.c.l.b16 %v238
    %v421 = vunpack.c.h.b16 %v238
    %v422 = vunpack.c.l.b16 %v239
    %v423 = vunpack.c.h.b16 %v239
    %v424 = vunpack.c.l.b16 %v240
    %v425 = vunpack.c.h.b16 %v240
    %v426 = vunpack.c.l.b16 %v241
    %v427 = vunpack.c.h.b16 %v241
    %v428 = vunpack.c.l.b16 %v242
    %v429 = vunpack.c.h.b16 %v242
    %v430 = vunpack.c.l.b16 %v243
    %v431 = vunpack.c.h.b16 %v243
    %v432 = vunpack.c.l.b16 %v244
    %v433 = vunpack.c.h.b16 %v244
    %v434 = vunpack.c.l.b16 %v245
    %v435 = vunpack.c.h.b16 %v245
    %v436 = vunpack.c.l.b16 %v246
    %v437 = vunpack.c.h.b16 %v246
    %v438 = vunpack.c.l.b16 %v247
    %v439 = vunpack.c.h.b16 %v247
    %v440 = vunpack.c.l.b16 %v248
    %v441 = vunpack.c.h.b16 %v248
    %v442 = vunpack.c.l.b16 %v249
    %v443 = vunpack.c.h.b16 %v249
    %v444 = vunpack.c.l.b16 %v250
    %v445 = vunpack.c.h.b16 %v250
    %v446 = vunpack.c.l.b16 %v251
    %v447 = vunpack.c.h.b16 %v251
    %v448 = vunpack.c.l.b16 %v252
    %v449 = vunpack.c.h.b16 %v252
    %v450 = vunpack.c.l.b16 %v253
    %v451 = vunpack.c.h.b16 %v253
    %v452 = vunpack.c.l.b16 %v254
    %v453 = vunpack.c.h.b16 %v254
    %v454 = vunpack.c.l.b16 %v255
    %v455 = vunpack.c.h.b16 %v255
    %v456 = vunpack.c.l.b16 %v256
    %v457 = vunpack.c.h.b16 %v256
    %v458 = vunpack.c.l.b16 %v257
    %v459 = vunpack.c.h.b16 %v257
    %v460 = vpack.c.b16 %v336, %v332
    %v461 = vpack.c.b16 %v337, %v333
    %v462 = vpack.c.b16 %v338, %v334
    %v463 = vpack.c.b16 %v339, %v335
    %v464 = vpack.c.b16 %v344, %v340
    %v465 = vpack.c.b16 %v345, %v341
    %v466 = vpack.c.b16 %v346, %v342
    %v467 = vpack.c.b16 %v347, %v343
    %v468 = vpack.c.b16 %v352, %v348
    %v469 = vpack.c.b16 %v353, %v349
    %v470 = vpack.c.b16 %v354, %v350
    %v471 = vpack.c.b16 %v355, %v351
    %v472 = vpack.c.b16 %v360, %v356
    %v473 = vpack.c.b16 %v361, %v357
    %v474 = vpack.c.b16 %v362, %v358
    %v475 = vpack.c.b16 %v363, %v359
    %v476 = vpack.c.b16 %v368, %v364
    %v477 = vpack.c.b16 %v369, %v365
    %v478 = vpack.c.b16 %v370, %v366
    %v479 = vpack.c.b16 %v371, %v367
    %v480 = vpack.c.b16 %v376, %v372
    %v481 = vpack.c.b16 %v377, %v373
    %v482 = vpack.c.b16 %v378, %v374
    %v483 = vpack.c.b16 %v379, %v375
    %v484 = vpack.c.b16 %v384, %v380
    %v485 = vpack.c.b16 %v385, %v381
    %v486 = vpack.c.b16 %v386, %v382
    %v487 = vpack.c.b16 %v387, %v383
    %v488 = vpack.c.b16 %v392, %v388
    %v489 = vpack.c.b16 %v393, %v389
    %v490 = vpack.c.b16 %v394, %v390
    %v491 = vpack.c.b16 %v395, %v391
    %v492 = vpack.c.b16 %v400, %v396
    %v493 = vpack.c.b16 %v401, %v397
    %v494 = vpack.c.b16 %v402, %v398
    %v495 = vpack.c.b16 %v403, %v399
    %v496 = vpack.c.b16 %v408, %v404
    %v497 = vpack.c.b16 %v409, %v405
    %v498 = vpack.c.b16 %v410, %v406
    %v499 = vpack.c.b16 %v411, %v407
    %v500 = vpack.c.b16 %v416, %v412
    %v501 = vpack.c.b16 %v417, %v413
    %v502 = vpack.c.b16 %v418, %v414
    %v503 = vpack.c.b16 %v419, %v415
    %v504 = vpack.c.b16 %v424, %v420
    %v505 = vpack.c.b16 %v425, %v421
    %v506 = vpack.c.b16 %v426, %v422
    %v507 = vpack.c.b16 %v427, %v423
    %v508 = vpack.c.b16 %v432, %v428
    %v509 = vpack.c.b16 %v433, %v429
    %v510 = vpack.c.b16 %v434, %v430
    %v511 = vpack.c.b16 %v435, %v431
    %v512 = vpack.c.b16 %v440, %v436
    %v513 = vpack.c.b16 %v441, %v437
    %v514 = vpack.c.b16 %v442, %v438
    %v515 = vpack.c.b16 %v443, %v439
    %v516 = vpack.c.b16 %v448, %v444
    %v517 = vpack.c.b16 %v449, %v445
    %v518 = vpack.c.b16 %v450, %v446
    %v519 = vpack.c.b16 %v451, %v447
    %v520 = vpack.c.b16 %v456, %v452
    %v521 = vpack.c.b16 %v457, %v453
    %v522 = vpack.c.b16 %v458, %v454
    %v523 = vpack.c.b16 %v459, %v455
    %588 = vmatpush.bf16.msra.mxu0 %v488
    %589 = vmatpush.bf16.msra.mxu0 %v484
    %590 = vmatpush.bf16.msra.mxu0 %v480
    %591 = vmatpush.bf16.msra.mxu0 %v476
    %592 = vmatpush.bf16.msra.mxu0 %v472
    %593 = vmatpush.bf16.msra.mxu0 %v468
    %594 = vmatpush.bf16.msra.mxu0 %v464
    %595 = vmatpush.bf16.msra.mxu0 %v460
    %596 = vmatmul.bf16.gmra.mxu0 %v192
    %v597 = vpop.f32.mrf.mxu0
    %v598 = vadd.f32 %v260, %v597
    %v599 = vpop.f32.mrf.mxu0
    %600 = vdwg.mxu0
    %601 = vmatpush.bf16.msra.mxu0 %v520
    %602 = vmatpush.bf16.msra.mxu0 %v516
    %603 = vmatpush.bf16.msra.mxu0 %v512
    %604 = vmatpush.bf16.msra.mxu0 %v508
    %605 = vmatpush.bf16.msra.mxu0 %v504
    %606 = vmatpush.bf16.msra.mxu0 %v500
    %607 = vmatpush.bf16.msra.mxu0 %v496
    %608 = vmatpush.bf16.msra.mxu0 %v492
    %609 = vmatmul.bf16.gmra.mxu0 %v193
    %v610 = vpop.f32.mrf.mxu0
    %v611 = vadd.f32 %v598, %v610
    %v612 = vpop.f32.mrf.mxu0
    %613 = vdwg.mxu0
    %614 = vmatpush.bf16.msra.mxu0 %v489
    %615 = vmatpush.bf16.msra.mxu0 %v485
    %616 = vmatpush.bf16.msra.mxu0 %v481
    %617 = vmatpush.bf16.msra.mxu0 %v477
    %618 = vmatpush.bf16.msra.mxu0 %v473
    %619 = vmatpush.bf16.msra.mxu0 %v469
    %620 = vmatpush.bf16.msra.mxu0 %v465
    %621 = vmatpush.bf16.msra.mxu0 %v461
    %622 = vmatmul.bf16.gmra.mxu0 %v192
    %v623 = vpop.f32.mrf.mxu0
    %v624 = vadd.f32 %v261, %v623
    %v625 = vpop.f32.mrf.mxu0
    %626 = vdwg.mxu0
    %627 = vmatpush.bf16.msra.mxu0 %v521
    %628 = vmatpush.bf16.msra.mxu0 %v517
    %629 = vmatpush.bf16.msra.mxu0 %v513
    %630 = vmatpush.bf16.msra.mxu0 %v509
    %631 = vmatpush.bf16.msra.mxu0 %v505
    %632 = vmatpush.bf16.msra.mxu0 %v501
    %633 = vmatpush.bf16.msra.mxu0 %v497
    %634 = vmatpush.bf16.msra.mxu0 %v493
    %635 = vmatmul.bf16.gmra.mxu0 %v193
    %v636 = vpop.f32.mrf.mxu0
    %v637 = vadd.f32 %v624, %v636
    %v638 = vpop.f32.mrf.mxu0
    %639 = vdwg.mxu0
    %640 = vmatpush.bf16.msra.mxu0 %v490
    %641 = vmatpush.bf16.msra.mxu0 %v486
    %642 = vmatpush.bf16.msra.mxu0 %v482
    %643 = vmatpush.bf16.msra.mxu0 %v478
    %644 = vmatpush.bf16.msra.mxu0 %v474
    %645 = vmatpush.bf16.msra.mxu0 %v470
    %646 = vmatpush.bf16.msra.mxu0 %v466
    %647 = vmatpush.bf16.msra.mxu0 %v462
    %648 = vmatmul.bf16.gmra.mxu0 %v192
    %v649 = vpop.f32.mrf.mxu0
    %v650 = vadd.f32 %v262, %v649
    %v651 = vpop.f32.mrf.mxu0
    %652 = vdwg.mxu0
    %653 = vmatpush.bf16.msra.mxu0 %v522
    %654 = vmatpush.bf16.msra.mxu0 %v518
    %655 = vmatpush.bf16.msra.mxu0 %v514
    %656 = vmatpush.bf16.msra.mxu0 %v510
    %657 = vmatpush.bf16.msra.mxu0 %v506
    %658 = vmatpush.bf16.msra.mxu0 %v502
    %659 = vmatpush.bf16.msra.mxu0 %v498
    %660 = vmatpush.bf16.msra.mxu0 %v494
    %661 = vmatmul.bf16.gmra.mxu0 %v193
    %v662 = vpop.f32.mrf.mxu0
    %v663 = vadd.f32 %v650, %v662
    %v664 = vpop.f32.mrf.mxu0
    %665 = vdwg.mxu0
    %666 = vmatpush.bf16.msra.mxu0 %v491
    %667 = vmatpush.bf16.msra.mxu0 %v487
    %668 = vmatpush.bf16.msra.mxu0 %v483
    %669 = vmatpush.bf16.msra.mxu0 %v479
    %670 = vmatpush.bf16.msra.mxu0 %v475
    %671 = vmatpush.bf16.msra.mxu0 %v471
    %672 = vmatpush.bf16.msra.mxu0 %v467
    %673 = vmatpush.bf16.msra.mxu0 %v463
    %674 = vmatmul.bf16.gmra.mxu0 %v192
    %v675 = vpop.f32.mrf.mxu0
    %v676 = vadd.f32 %v263, %v675
    %v677 = vpop.f32.mrf.mxu0
    %678 = vdwg.mxu0
    %679 = vmatpush.bf16.msra.mxu0 %v523
    %680 = vmatpush.bf16.msra.mxu0 %v519
    %681 = vmatpush.bf16.msra.mxu0 %v515
    %682 = vmatpush.bf16.msra.mxu0 %v511
    %683 = vmatpush.bf16.msra.mxu0 %v507
    %684 = vmatpush.bf16.msra.mxu0 %v503
    %685 = vmatpush.bf16.msra.mxu0 %v499
    %686 = vmatpush.bf16.msra.mxu0 %v495
    %687 = vmatmul.bf16.gmra.mxu0 %v193
    %v688 = vpop.f32.mrf.mxu0
    %v689 = vadd.f32 %v676, %v688
    %v690 = vpop.f32.mrf.mxu0
    %691 = vdwg.mxu0
    %v692 = vmax.f32 %v611, 0.0
    %v693 = vmax.f32 %v637, 0.0
    %v694 = vmax.f32 %v663, 0.0
    %v695 = vmax.f32 %v689, 0.0
    %v696 = vpack.c.bf16 %v692, %v692
    %v697 = vpack.c.bf16 %v693, %v693
    %v698 = vpack.c.bf16 %v694, %v694
    %v699 = vpack.c.bf16 %v695, %v695
    %v700 = vld [vmem:[#allocation11] sm:$0xf]
    %v701 = vld [vmem:[#allocation11 + $0x4] sm:$0xf]
    %v702 = vld [vmem:[#allocation11 + $0x8] sm:$0xf]
    %v703 = vld [vmem:[#allocation11 + $0xc] sm:$0xf]
    %v704 = vld [vmem:[#allocation11 + $0x10] sm:$0xf]
    %v705 = vld [vmem:[#allocation11 + $0x14] sm:$0xf]
    %v706 = vld [vmem:[#allocation11 + $0x18] sm:$0xf]
    %v707 = vld [vmem:[#allocation11 + $0x1c] sm:$0xf]
    %v708 = vld [vmem:[#allocation11 + $0x20] sm:$0xf]
    %v709 = vld [vmem:[#allocation11 + $0x24] sm:$0xf]
    %v710 = vld [vmem:[#allocation11 + $0x28] sm:$0xf]
    %v711 = vld [vmem:[#allocation11 + $0x2c] sm:$0xf]
    %v712 = vld [vmem:[#allocation11 + $0x30] sm:$0xf]
    %v713 = vld [vmem:[#allocation11 + $0x34] sm:$0xf]
    %v714 = vld [vmem:[#allocation11 + $0x38] sm:$0xf]
    %v715 = vld [vmem:[#allocation11 + $0x3c] sm:$0xf]
    %v716 = vld [vmem:[#allocation11 + $0x40] sm:$0xf]
    %v717 = vld [vmem:[#allocation11 + $0x44] sm:$0xf]
    %v718 = vld [vmem:[#allocation11 + $0x48] sm:$0xf]
    %v719 = vld [vmem:[#allocation11 + $0x4c] sm:$0xf]
    %v720 = vld [vmem:[#allocation11 + $0x50] sm:$0xf]
    %v721 = vld [vmem:[#allocation11 + $0x54] sm:$0xf]
    %v722 = vld [vmem:[#allocation11 + $0x58] sm:$0xf]
    %v723 = vld [vmem:[#allocation11 + $0x5c] sm:$0xf]
    %v724 = vld [vmem:[#allocation11 + $0x60] sm:$0xf]
    %v725 = vld [vmem:[#allocation11 + $0x64] sm:$0xf]
    %v726 = vld [vmem:[#allocation11 + $0x68] sm:$0xf]
    %v727 = vld [vmem:[#allocation11 + $0x6c] sm:$0xf]
    %v728 = vld [vmem:[#allocation11 + $0x70] sm:$0xf]
    %v729 = vld [vmem:[#allocation11 + $0x74] sm:$0xf]
    %v730 = vld [vmem:[#allocation11 + $0x78] sm:$0xf]
    %v731 = vld [vmem:[#allocation11 + $0x7c] sm:$0xf]
    %v732 = vld [vmem:[#allocation11 + $0x80] sm:$0xf]
    %v733 = vld [vmem:[#allocation11 + $0x84] sm:$0xf]
    %v734 = vld [vmem:[#allocation11 + $0x88] sm:$0xf]
    %v735 = vld [vmem:[#allocation11 + $0x8c] sm:$0xf]
    %v736 = vld [vmem:[#allocation11 + $0x90] sm:$0xf]
    %v737 = vld [vmem:[#allocation11 + $0x94] sm:$0xf]
    %v738 = vld [vmem:[#allocation11 + $0x98] sm:$0xf]
    %v739 = vld [vmem:[#allocation11 + $0x9c] sm:$0xf]
    %v740 = vld [vmem:[#allocation11 + $0xa0] sm:$0xf]
    %v741 = vld [vmem:[#allocation11 + $0xa4] sm:$0xf]
    %v742 = vld [vmem:[#allocation11 + $0xa8] sm:$0xf]
    %v743 = vld [vmem:[#allocation11 + $0xac] sm:$0xf]
    %v744 = vld [vmem:[#allocation11 + $0xb0] sm:$0xf]
    %v745 = vld [vmem:[#allocation11 + $0xb4] sm:$0xf]
    %v746 = vld [vmem:[#allocation11 + $0xb8] sm:$0xf]
    %v747 = vld [vmem:[#allocation11 + $0xbc] sm:$0xf]
    %v748 = vld [vmem:[#allocation11 + $0xc0] sm:$0xf]
    %v749 = vld [vmem:[#allocation11 + $0xc4] sm:$0xf]
    %v750 = vld [vmem:[#allocation11 + $0xc8] sm:$0xf]
    %v751 = vld [vmem:[#allocation11 + $0xcc] sm:$0xf]
    %v752 = vld [vmem:[#allocation11 + $0xd0] sm:$0xf]
    %v753 = vld [vmem:[#allocation11 + $0xd4] sm:$0xf]
    %v754 = vld [vmem:[#allocation11 + $0xd8] sm:$0xf]
    %v755 = vld [vmem:[#allocation11 + $0xdc] sm:$0xf]
    %v756 = vld [vmem:[#allocation11 + $0xe0] sm:$0xf]
    %v757 = vld [vmem:[#allocation11 + $0xe4] sm:$0xf]
    %v758 = vld [vmem:[#allocation11 + $0xe8] sm:$0xf]
    %v759 = vld [vmem:[#allocation11 + $0xec] sm:$0xf]
    %v760 = vld [vmem:[#allocation11 + $0xf0] sm:$0xf]
    %v761 = vld [vmem:[#allocation11 + $0xf4] sm:$0xf]
    %v762 = vld [vmem:[#allocation11 + $0xf8] sm:$0xf]
    %v763 = vld [vmem:[#allocation11 + $0xfc] sm:$0xf]
    %v764 = vld [vmem:[%s6] sm:$0x1]
    %v766 = vperm.slane %v764, 0
    %v832 = vunpack.c.l.b16 %v700
    %v833 = vunpack.c.l.b16 %v701
    %v834 = vunpack.c.l.b16 %v702
    %v835 = vunpack.c.l.b16 %v703
    %v836 = vunpack.c.l.b16 %v704
    %v837 = vunpack.c.l.b16 %v705
    %v838 = vunpack.c.l.b16 %v706
    %v839 = vunpack.c.l.b16 %v707
    %v840 = vunpack.c.l.b16 %v708
    %v841 = vunpack.c.l.b16 %v709
    %v842 = vunpack.c.l.b16 %v710
    %v843 = vunpack.c.l.b16 %v711
    %v844 = vunpack.c.l.b16 %v712
    %v845 = vunpack.c.l.b16 %v713
    %v846 = vunpack.c.l.b16 %v714
    %v847 = vunpack.c.l.b16 %v715
    %v848 = vunpack.c.l.b16 %v716
    %v849 = vunpack.c.l.b16 %v717
    %v850 = vunpack.c.l.b16 %v718
    %v851 = vunpack.c.l.b16 %v719
    %v852 = vunpack.c.l.b16 %v720
    %v853 = vunpack.c.l.b16 %v721
    %v854 = vunpack.c.l.b16 %v722
    %v855 = vunpack.c.l.b16 %v723
    %v856 = vunpack.c.l.b16 %v724
    %v857 = vunpack.c.l.b16 %v725
    %v858 = vunpack.c.l.b16 %v726
    %v859 = vunpack.c.l.b16 %v727
    %v860 = vunpack.c.l.b16 %v728
    %v861 = vunpack.c.l.b16 %v729
    %v862 = vunpack.c.l.b16 %v730
    %v863 = vunpack.c.l.b16 %v731
    %v864 = vunpack.c.l.b16 %v732
    %v865 = vunpack.c.l.b16 %v733
    %v866 = vunpack.c.l.b16 %v734
    %v867 = vunpack.c.l.b16 %v735
    %v868 = vunpack.c.l.b16 %v736
    %v869 = vunpack.c.l.b16 %v737
    %v870 = vunpack.c.l.b16 %v738
    %v871 = vunpack.c.l.b16 %v739
    %v872 = vunpack.c.l.b16 %v740
    %v873 = vunpack.c.l.b16 %v741
    %v874 = vunpack.c.l.b16 %v742
    %v875 = vunpack.c.l.b16 %v743
    %v876 = vunpack.c.l.b16 %v744
    %v877 = vunpack.c.l.b16 %v745
    %v878 = vunpack.c.l.b16 %v746
    %v879 = vunpack.c.l.b16 %v747
    %v880 = vunpack.c.l.b16 %v748
    %v881 = vunpack.c.l.b16 %v749
    %v882 = vunpack.c.l.b16 %v750
    %v883 = vunpack.c.l.b16 %v751
    %v884 = vunpack.c.l.b16 %v752
    %v885 = vunpack.c.l.b16 %v753
    %v886 = vunpack.c.l.b16 %v754
    %v887 = vunpack.c.l.b16 %v755
    %v888 = vunpack.c.l.b16 %v756
    %v889 = vunpack.c.l.b16 %v757
    %v890 = vunpack.c.l.b16 %v758
    %v891 = vunpack.c.l.b16 %v759
    %v892 = vunpack.c.l.b16 %v760
    %v893 = vunpack.c.l.b16 %v761
    %v894 = vunpack.c.l.b16 %v762
    %v895 = vunpack.c.l.b16 %v763
    %v896 = vpack.c.b16 %v833, %v832
    %v897 = vpack.c.b16 %v835, %v834
    %v898 = vpack.c.b16 %v837, %v836
    %v899 = vpack.c.b16 %v839, %v838
    %v900 = vpack.c.b16 %v841, %v840
    %v901 = vpack.c.b16 %v843, %v842
    %v902 = vpack.c.b16 %v845, %v844
    %v903 = vpack.c.b16 %v847, %v846
    %v904 = vpack.c.b16 %v849, %v848
    %v905 = vpack.c.b16 %v851, %v850
    %v906 = vpack.c.b16 %v853, %v852
    %v907 = vpack.c.b16 %v855, %v854
    %v908 = vpack.c.b16 %v857, %v856
    %v909 = vpack.c.b16 %v859, %v858
    %v910 = vpack.c.b16 %v861, %v860
    %v911 = vpack.c.b16 %v863, %v862
    %v912 = vpack.c.b16 %v865, %v864
    %v913 = vpack.c.b16 %v867, %v866
    %v914 = vpack.c.b16 %v869, %v868
    %v915 = vpack.c.b16 %v871, %v870
    %v916 = vpack.c.b16 %v873, %v872
    %v917 = vpack.c.b16 %v875, %v874
    %v918 = vpack.c.b16 %v877, %v876
    %v919 = vpack.c.b16 %v879, %v878
    %v920 = vpack.c.b16 %v881, %v880
    %v921 = vpack.c.b16 %v883, %v882
    %v922 = vpack.c.b16 %v885, %v884
    %v923 = vpack.c.b16 %v887, %v886
    %v924 = vpack.c.b16 %v889, %v888
    %v925 = vpack.c.b16 %v891, %v890
    %v926 = vpack.c.b16 %v893, %v892
    %v927 = vpack.c.b16 %v895, %v894
    %960 = vmatpush.bf16.msra.mxu0 %v903
    %961 = vmatpush.bf16.msra.mxu0 %v902
    %962 = vmatpush.bf16.msra.mxu0 %v901
    %963 = vmatpush.bf16.msra.mxu0 %v900
    %964 = vmatpush.bf16.msra.mxu0 %v899
    %965 = vmatpush.bf16.msra.mxu0 %v898
    %966 = vmatpush.bf16.msra.mxu0 %v897
    %967 = vmatpush.bf16.msra.mxu0 %v896
    %968 = vmatmul.bf16.gmra.mxu0 %v696
    %v969 = vpop.f32.mrf.mxu0
    %v970 = vadd.f32 %v766, %v969
    %v971 = vpop.f32.mrf.mxu0
    %972 = vdwg.mxu0
    %973 = vmatpush.bf16.msra.mxu0 %v911
    %974 = vmatpush.bf16.msra.mxu0 %v910
    %975 = vmatpush.bf16.msra.mxu0 %v909
    %976 = vmatpush.bf16.msra.mxu0 %v908
    %977 = vmatpush.bf16.msra.mxu0 %v907
    %978 = vmatpush.bf16.msra.mxu0 %v906
    %979 = vmatpush.bf16.msra.mxu0 %v905
    %980 = vmatpush.bf16.msra.mxu0 %v904
    %981 = vmatmul.bf16.gmra.mxu0 %v697
    %v982 = vpop.f32.mrf.mxu0
    %v983 = vadd.f32 %v970, %v982
    %v984 = vpop.f32.mrf.mxu0
    %985 = vdwg.mxu0
    %986 = vmatpush.bf16.msra.mxu0 %v919
    %987 = vmatpush.bf16.msra.mxu0 %v918
    %988 = vmatpush.bf16.msra.mxu0 %v917
    %989 = vmatpush.bf16.msra.mxu0 %v916
    %990 = vmatpush.bf16.msra.mxu0 %v915
    %991 = vmatpush.bf16.msra.mxu0 %v914
    %992 = vmatpush.bf16.msra.mxu0 %v913
    %993 = vmatpush.bf16.msra.mxu0 %v912
    %994 = vmatmul.bf16.gmra.mxu0 %v698
    %v995 = vpop.f32.mrf.mxu0
    %v996 = vadd.f32 %v983, %v995
    %v997 = vpop.f32.mrf.mxu0
    %998 = vdwg.mxu0
    %999 = vmatpush.bf16.msra.mxu0 %v927
    %1000 = vmatpush.bf16.msra.mxu0 %v926
    %1001 = vmatpush.bf16.msra.mxu0 %v925
    %1002 = vmatpush.bf16.msra.mxu0 %v924
    %1003 = vmatpush.bf16.msra.mxu0 %v923
    %1004 = vmatpush.bf16.msra.mxu0 %v922
    %1005 = vmatpush.bf16.msra.mxu0 %v921
    %1006 = vmatpush.bf16.msra.mxu0 %v920
    %1007 = vmatmul.bf16.gmra.mxu0 %v699
    %v1008 = vpop.f32.mrf.mxu0
    %v1009 = vadd.f32 %v996, %v1008
    %v1010 = vpop.f32.mrf.mxu0
    %1011 = vdwg.mxu0
    %1012 = vst [vmem:[#allocation13] sm:$0xff] %v1009
    // Predicated region
    $region54: #{tpu_custom_call.1} parent=1 // pred_check
      _
    $region55: #{tpu_custom_call.1} parent=1 // pred_check_branch
      %1014 = sbr.rel (0) target = $region57
    $region56: #{tpu_custom_call.1} parent=1 // pred_region
      %1016 = vsyncadd [#allocation4], 0
      %s1018 = sshll.u32 [#allocation13], 4
      %s1019 = int_to_ptr.vmem [resolvable:$true] %s1018
      %s1020 = sshll.u32 %s7, 4
      %s1021 = int_to_ptr.hbm [resolvable:$true] %s1020
      %1023 = dma.vmem_to_hbm [thread:$0]  %s1019, 128, %s1021, [#allocation4]
    $region57: #{tpu_custom_call.1} parent=1 // pred_fallthru
      _
    // Predicated region
    $region58: #{tpu_custom_call.1} parent=1 // pred_check
      _
    $region59: #{tpu_custom_call.1} parent=1 // pred_check_branch
      %1025 = sbr.rel (0) target = $region61
    $region60: #{tpu_custom_call.1} parent=1 // pred_region
      %1027 = dma.done [#allocation4], 128
    $region61: #{tpu_custom_call.1} parent=1 // pred_fallthru
      _
    %1028 = vsyncpa [#allocation3], 1
    %1029 = vsyncpa [#allocation6], 1
    %1030 = vsyncpa [#allocation9], 1
    %1031 = vsyncpa [#allocation12], 1
    %1032 = vsyncpa [#allocation4], 1

</llo_original>
